<compile_context>
chip_gen: v7x
topology: tpu7x:2x2x1
jax: 0.10.0
libtpu: 0.0.40
codegen_flags: <defaults>
</compile_context>

<pallas_src>
import functools

import jax
import jax.numpy as jnp
from jax.experimental import pallas as pl
from jax.experimental.pallas import tpu as pltpu


# ---------------------------------------------------------------------------
# Helpers
# ---------------------------------------------------------------------------
def _round_up(n, m):
    return (n + m - 1) // m * m


@functools.lru_cache(maxsize=1)
def _vmem_caps():
    """(working_budget_bytes, vmem_limit_cap_bytes) for the local chip."""
    try:
        cap = int(pltpu.get_tpu_info().vmem_capacity_bytes)
    except Exception:
        cap = 64 * 1024 * 1024  # conservative fallback: v7x per-TensorCore VMEM
    budget = min(cap // 3, 48 * 1024 * 1024)        # tile-sizing working budget
    limit_cap = min(cap * 3 // 4, 96 * 1024 * 1024)  # scoped-VMEM limit ceiling
    return budget, limit_cap


def _pick_block_h(h_pad, desired):
    """Largest multiple of 128 that divides h_pad and is <= desired."""
    desired = max(128, min(desired, h_pad))
    n = h_pad // 128
    best = 128
    for d in range(1, n + 1):
        if n % d == 0 and d * 128 <= desired:
            best = d * 128
    return best


def _vmem_estimate(block_m, block_h, e_pad, cdt_bytes, out_bytes, resident):
    x_t = 2 * block_m * e_pad * cdt_bytes              # double-buffered x tiles
    w_t = 2 * 2 * e_pad * block_h * cdt_bytes           # w1 + w2 tiles (x2 bufs)
    b_t = 2 * 8 * (block_h + e_pad) * 4                 # biases (sublane-padded)
    out_t = 2 * block_m * e_pad * out_bytes              # output tiles
    act_t = block_m * block_h * (4 + cdt_bytes)          # f32 hidden + bf16 copy
    acc_t = 0 if resident else block_m * e_pad * 4       # f32 accumulator
    return x_t + w_t + b_t + out_t + act_t + acc_t


# ---------------------------------------------------------------------------
# GELU (tanh approximation -- tanh lands on the EUP slot, ~7 VALU ops/element).
# PyTorch nn.GELU() default is exact erf; difference <~1e-3 (accepted).
# ---------------------------------------------------------------------------
_SQRT_2_OVER_PI = 0.7978845608028654


def _gelu_tanh(x):
    return 0.5 * x * (1.0 + jnp.tanh(_SQRT_2_OVER_PI * (x + 0.044715 * (x * x * x))))


# ---------------------------------------------------------------------------
# Kernels
# ---------------------------------------------------------------------------
def _ffn_kernel_resident(x_ref, w1_ref, b1_ref, w2_ref, b2_ref, o_ref):
    # Weights are VMEM-resident (constant index_map -> DMA'd once); no scratch.
    h = jnp.dot(x_ref[...], w1_ref[...],
                preferred_element_type=jnp.float32) + b1_ref[...]
    g = _gelu_tanh(h)
    y = jnp.dot(g.astype(w2_ref.dtype), w2_ref[...],
                preferred_element_type=jnp.float32) + b2_ref[...]
    o_ref[...] = y.astype(o_ref.dtype)


def _ffn_kernel_tiled(x_ref, w1_ref, b1_ref, w2_ref, b2_ref, o_ref, acc_ref):
    # grid = (row tiles ["parallel"], hidden tiles ["arbitrary"]).
    j = pl.program_id(1)

    @pl.when(j == 0)
    def _():
        # fc2 bias folded into the accumulator init.
        acc_ref[...] = jnp.broadcast_to(b2_ref[...], acc_ref.shape)

    h = jnp.dot(x_ref[...], w1_ref[...],
                preferred_element_type=jnp.float32) + b1_ref[...]
    g = _gelu_tanh(h)
    acc_ref[...] += jnp.dot(g.astype(w2_ref.dtype), w2_ref[...],
                            preferred_element_type=jnp.float32)

    @pl.when(j == pl.num_programs(1) - 1)
    def _():
        o_ref[...] = acc_ref[...].astype(o_ref.dtype)


# ---------------------------------------------------------------------------
# Parameter preparation (hoisted out of the per-call path: pad + cast once)
# ---------------------------------------------------------------------------
def prepare_ffn_params(w1, b1, w2, b2, *, compute_dtype=jnp.bfloat16, block_h=256):
    """w1: (E, H); b1: (H,); w2: (H, E); b2: (E,) -> padded, cast params."""
    E, H = w1.shape
    e_pad = _round_up(E, 128)
    h_pad = _round_up(H, 128)
    cdt_bytes = jnp.dtype(compute_dtype).itemsize
    budget, _ = _vmem_caps()

    weights_resident = 2 * 2 * e_pad * h_pad * cdt_bytes <= budget // 2
    if not weights_resident:
        # Hidden dim will be streamed in block_h tiles; pad H to a multiple.
        block_h = _round_up(max(128, min(block_h, h_pad)), 128)
        h_pad = _round_up(H, block_h)

    w1p = jnp.pad(w1, ((0, e_pad - E), (0, h_pad - H))).astype(compute_dtype)
    w2p = jnp.pad(w2, ((0, h_pad - H), (0, e_pad - E))).astype(compute_dtype)
    b1p = jnp.pad(b1, ((0, h_pad - H),)).reshape(1, h_pad).astype(jnp.float32)
    b2p = jnp.pad(b2, ((0, e_pad - E),)).reshape(1, e_pad).astype(jnp.float32)
    return w1p, b1p, w2p, b2p


# ---------------------------------------------------------------------------
# Wrapper
# ---------------------------------------------------------------------------
@functools.partial(jax.jit, static_argnames=("block_m", "block_h", "_force_tiled"))
def feed_forward(x, w1p, b1p, w2p, b2p, *, block_m=256, block_h=256,
                 _force_tiled=False):
    """x: (B, S, E); padded params from prepare_ffn_params."""
    B, S, E = x.shape
    M = B * S
    e_pad, h_pad = w1p.shape
    compute_dtype = w1p.dtype
    cdt_bytes = jnp.dtype(compute_dtype).itemsize
    out_dtype = x.dtype
    out_bytes = jnp.dtype(out_dtype).itemsize

    budget, limit_cap = _vmem_caps()

    # Weight-resident fast path: w1+w2 (double-buffered) fit comfortably in the
    # working budget -> 1-D grid over rows, weights DMA'd once.
    resident = (not _force_tiled) and (
        2 * 2 * e_pad * h_pad * cdt_bytes <= budget // 2)
    blk_h = h_pad if resident else _pick_block_h(h_pad, block_h)

    # Row tile: multiple of 16 (bf16 sublane packing), capped at the padded row
    # count.  No forced megacore split: tiny-batch calls get one full tile.
    blk_m = _round_up(max(16, min(block_m, _round_up(M, 16))), 16)

    # Shrink to fit the VMEM working budget: rows first, then hidden tiles.
    while (_vmem_estimate(blk_m, blk_h, e_pad, cdt_bytes, out_bytes, resident)
           > budget and blk_m > 16):
        blk_m = max(16, _round_up(blk_m // 2, 16))
    while (_vmem_estimate(blk_m, blk_h, e_pad, cdt_bytes, out_bytes, resident)
           > budget and blk_h > 128):
        resident = False
        blk_h = _pick_block_h(h_pad, blk_h // 2)

    m_pad = _round_up(M, blk_m)
    n_m = m_pad // blk_m

    # Only x is padded per call (zero rows/cols contribute nothing; gelu(0)=0).
    xp = jnp.pad(x.reshape(M, E),
                 ((0, m_pad - M), (0, e_pad - E))).astype(compute_dtype)

    est = _vmem_estimate(blk_m, blk_h, e_pad, cdt_bytes, out_bytes, resident)
    vmem_limit = int(min(max(2 * est, 32 * 1024 * 1024), limit_cap))

    weight_bytes = (w1p.size + w2p.size) * cdt_bytes + (b1p.size + b2p.size) * 4
    cost = pl.CostEstimate(
        flops=4 * m_pad * e_pad * h_pad,
        transcendentals=m_pad * h_pad,  # one tanh per hidden element
        bytes_accessed=int(m_pad * e_pad * (cdt_bytes + out_bytes)
                           + (1 if resident else n_m) * weight_bytes),
    )

    if resident:
        grid = (n_m,)
        in_specs = [
            pl.BlockSpec((blk_m, e_pad), lambda i: (i, 0)),   # x rows
            pl.BlockSpec((e_pad, h_pad), lambda i: (0, 0)),   # w1 (resident)
            pl.BlockSpec((1, h_pad),     lambda i: (0, 0)),   # b1 (resident)
            pl.BlockSpec((h_pad, e_pad), lambda i: (0, 0)),   # w2 (resident)
            pl.BlockSpec((1, e_pad),     lambda i: (0, 0)),   # b2 (resident)
        ]
        out_specs = pl.BlockSpec((blk_m, e_pad), lambda i: (i, 0))
        scratch = []
        kernel = _ffn_kernel_resident
        dims = ("parallel",)
    else:
        grid = (n_m, h_pad // blk_h)
        in_specs = [
            pl.BlockSpec((blk_m, e_pad), lambda i, j: (i, 0)),  # x rows
            pl.BlockSpec((e_pad, blk_h), lambda i, j: (0, j)),  # w1 tile
            pl.BlockSpec((1, blk_h),     lambda i, j: (0, j)),  # b1 tile
            pl.BlockSpec((blk_h, e_pad), lambda i, j: (j, 0)),  # w2 tile
            pl.BlockSpec((1, e_pad),     lambda i, j: (0, 0)),  # b2
        ]
        out_specs = pl.BlockSpec((blk_m, e_pad), lambda i, j: (i, 0))
        scratch = [pltpu.VMEM((blk_m, e_pad), jnp.float32)]
        kernel = _ffn_kernel_tiled
        dims = ("parallel", "arbitrary")

    out = pl.pallas_call(
        kernel,
        out_shape=jax.ShapeDtypeStruct((m_pad, e_pad), out_dtype),
        grid_spec=pltpu.PrefetchScalarGridSpec(
            num_scalar_prefetch=0,
            grid=grid,
            in_specs=in_specs,
            out_specs=out_specs,
            scratch_shapes=scratch,
        ),
        compiler_params=pltpu.CompilerParams(
            dimension_semantics=dims,
            vmem_limit_bytes=vmem_limit),
        cost_estimate=cost,
    )(xp, w1p, b1p, w2p, b2p)

    return out[:M, :E].reshape(B, S, E)


# ---------------------------------------------------------------------------
# References
# ---------------------------------------------------------------------------
def _reference(x, w1, b1, w2, b2, operand_dtype=jnp.float32, approximate=True):
    """fc2(gelu(fc1(x))) with operands quantized to `operand_dtype`, f32
    accumulation, and selectable GELU form (exact erf = PyTorch default)."""
    f32 = jnp.float32
    xq = x.astype(operand_dtype).astype(f32)
    w1q = w1.astype(operand_dtype).astype(f32)
    w2q = w2.astype(operand_dtype).astype(f32)
    h = jnp.einsum("bse,eh->bsh", xq, w1q) + b1
    g = jax.nn.gelu(h, approximate=approximate)
    gq = g.astype(operand_dtype).astype(f32)
    return jnp.einsum("bsh,he->bse", gq, w2q) + b2


if __name__ == "__main__":
    key = jax.random.PRNGKey(0)
    # TabTransformer defaults: 7 categorical cols + 1 continuous token -> seq=8,
    # cat_embed_dim=64, ff_hidden_dim=256; small batch.
    B, S, E, Hdim = 4, 8, 64, 256

    kx, k1, k2, k3, k4 = jax.random.split(key, 5)
    x = jax.random.normal(kx, (B, S, E), dtype=jnp.float32)

    # Deterministic param init mimicking nn.Linear: U(-1/sqrt(fan_in), +).
    lim1 = 1.0 / (E ** 0.5)
    lim2 = 1.0 / (Hdim ** 0.5)
    w1 = jax.random.uniform(k1, (E, Hdim), jnp.float32, -lim1, lim1)
    b1 = jax.random.uniform(k2, (Hdim,), jnp.float32, -lim1, lim1)
    w2 = jax.random.uniform(k3, (Hdim, E), jnp.float32, -lim2, lim2)
    b2 = jax.random.uniform(k4, (E,), jnp.float32, -lim2, lim2)

    # Parameters padded/cast once (hoisted out of the per-call path).
    w1p, b1p, w2p, b2p = prepare_ffn_params(w1, b1, w2, b2)

    # --- weight-resident fast path ---
    out = feed_forward(x, w1p, b1p, w2p, b2p)
    out = jax.block_until_ready(out)
    assert out.shape == (B, S, E)

    # Tight check vs a reference using the kernel's precision policy
    # (bf16 operands, f32 accumulate, tanh-approximate GELU).
    ref_q = _reference(x, w1, b1, w2, b2, operand_dtype=jnp.bfloat16,
                       approximate=True)
    assert jnp.allclose(out, ref_q, atol=5e-3, rtol=5e-3), \
        "mismatch vs bf16/tanh-gelu reference (resident path)"

    # Sanity check vs full-f32 exact-GELU (PyTorch nn.GELU() default) math —
    # covers bf16 quantization + tanh-vs-erf GELU difference.
    ref_f32 = _reference(x, w1, b1, w2, b2, operand_dtype=jnp.float32,
                         approximate=False)
    assert jnp.allclose(out, ref_f32, atol=5e-2, rtol=5e-2), \
        "mismatch vs f32 exact-GELU reference (resident path)"

    # --- also exercise the tiled (hidden-dim streamed) fallback path ---
    B2 = 16
    x2 = jax.random.normal(jax.random.PRNGKey(1), (B2, S, E), dtype=jnp.float32)
    out2 = feed_forward(x2, w1p, b1p, w2p, b2p,
                        block_m=64, block_h=128, _force_tiled=True)
    out2 = jax.block_until_ready(out2)
    ref2 = _reference(x2, w1, b1, w2, b2, operand_dtype=jnp.bfloat16,
                      approximate=True)
    assert jnp.allclose(out2, ref2, atol=5e-3, rtol=5e-3), \
        "mismatch vs bf16/tanh-gelu reference (tiled path)"

    print("KERNEL_OK")
</pallas_src>

<mosaic_0001>
module attributes {stable_mosaic.version = 11 : i64} {
  func.func @_ffn_kernel_resident(%arg0: i32, %arg1: memref<32x128xbf16, #tpu.memory_space<vmem>>, %arg2: memref<128x256xbf16, #tpu.memory_space<vmem>>, %arg3: memref<1x256xf32, #tpu.memory_space<vmem>>, %arg4: memref<256x128xbf16, #tpu.memory_space<vmem>>, %arg5: memref<1x128xf32, #tpu.memory_space<vmem>>, %arg6: memref<32x128xf32, #tpu.memory_space<vmem>>) attributes {dimension_semantics = [#tpu.dimension_semantics<parallel>], iteration_bounds = array<i64: 1>, scalar_prefetch = 0 : i64, scratch_operands = 0 : i64, tpu.core_type = #tpu.core_type<tc>, window_params = [{transform_indices = @transform_0, window_bounds = array<i64: 32, 128>}, {pipeline_mode = #tpu.pipeline_mode<synchronous>, transform_indices = @transform_1, window_bounds = array<i64: 128, 256>}, {pipeline_mode = #tpu.pipeline_mode<synchronous>, transform_indices = @transform_2, window_bounds = array<i64: 1, 256>}, {pipeline_mode = #tpu.pipeline_mode<synchronous>, transform_indices = @transform_3, window_bounds = array<i64: 256, 128>}, {pipeline_mode = #tpu.pipeline_mode<synchronous>, transform_indices = @transform_4, window_bounds = array<i64: 1, 128>}, {transform_indices = @transform_5, window_bounds = array<i64: 32, 128>}]} {
    %c0 = arith.constant 0 : index
    %c0_0 = arith.constant 0 : index
    %0 = vector.load %arg1[%c0, %c0_0] : memref<32x128xbf16, #tpu.memory_space<vmem>>, vector<32x128xbf16>
    %c0_1 = arith.constant 0 : index
    %c0_2 = arith.constant 0 : index
    %1 = vector.load %arg2[%c0_1, %c0_2] : memref<128x256xbf16, #tpu.memory_space<vmem>>, vector<128x256xbf16>
    %cst = arith.constant dense<0.000000e+00> : vector<32x256xf32>
    %2 = tpu.matmul %0, %1, %cst {dimension_numbers = #tpu.dot_dimension_numbers<[1], [0], [0], [1], [0, 0, 1, 1], [], []>} : vector<32x128xbf16>, vector<128x256xbf16>, vector<32x256xf32> -> vector<32x256xf32>
    %c0_3 = arith.constant 0 : index
    %c0_4 = arith.constant 0 : index
    %3 = vector.load %arg3[%c0_3, %c0_4] : memref<1x256xf32, #tpu.memory_space<vmem>>, vector<1x256xf32>
    %4 = vector.broadcast %3 : vector<1x256xf32> to vector<32x256xf32>
    %5 = arith.addf %2, %4 : vector<32x256xf32>
    %cst_5 = arith.constant 5.000000e-01 : f32
    %6 = vector.broadcast %cst_5 : f32 to vector<32x256xf32>
    %7 = arith.mulf %6, %5 : vector<32x256xf32>
    %8 = arith.mulf %5, %5 : vector<32x256xf32>
    %9 = arith.mulf %8, %5 : vector<32x256xf32>
    %cst_6 = arith.constant 4.471500e-02 : f32
    %10 = vector.broadcast %cst_6 : f32 to vector<32x256xf32>
    %11 = arith.mulf %10, %9 : vector<32x256xf32>
    %12 = arith.addf %5, %11 : vector<32x256xf32>
    %cst_7 = arith.constant 0.797884583 : f32
    %13 = vector.broadcast %cst_7 : f32 to vector<32x256xf32>
    %14 = arith.mulf %13, %12 : vector<32x256xf32>
    %15 = math.tanh %14 : vector<32x256xf32>
    %cst_8 = arith.constant 1.000000e+00 : f32
    %16 = vector.broadcast %cst_8 : f32 to vector<32x256xf32>
    %17 = arith.addf %16, %15 : vector<32x256xf32>
    %18 = arith.mulf %7, %17 : vector<32x256xf32>
    %19 = arith.truncf %18 : vector<32x256xf32> to vector<32x256xbf16>
    %c0_9 = arith.constant 0 : index
    %c0_10 = arith.constant 0 : index
    %20 = vector.load %arg4[%c0_9, %c0_10] : memref<256x128xbf16, #tpu.memory_space<vmem>>, vector<256x128xbf16>
    %cst_11 = arith.constant dense<0.000000e+00> : vector<32x128xf32>
    %21 = tpu.matmul %19, %20, %cst_11 {dimension_numbers = #tpu.dot_dimension_numbers<[1], [0], [0], [1], [0, 0, 1, 1], [], []>} : vector<32x256xbf16>, vector<256x128xbf16>, vector<32x128xf32> -> vector<32x128xf32>
    %c0_12 = arith.constant 0 : index
    %c0_13 = arith.constant 0 : index
    %22 = vector.load %arg5[%c0_12, %c0_13] : memref<1x128xf32, #tpu.memory_space<vmem>>, vector<1x128xf32>
    %23 = vector.broadcast %22 : vector<1x128xf32> to vector<32x128xf32>
    %24 = arith.addf %21, %23 : vector<32x128xf32>
    %c0_14 = arith.constant 0 : index
    %c0_15 = arith.constant 0 : index
    %25 = vector.load %arg6[%c0_14, %c0_15] : memref<32x128xf32, #tpu.memory_space<vmem>>, vector<32x128xf32>
    tpu.vector_store %arg6[%c0_14, %c0_15], %24 {strides = array<i32>} : memref<32x128xf32, #tpu.memory_space<vmem>>, vector<32x128xf32>,
    return
  }
  func.func @transform_0(%arg0: i32) -> (i32, i32) {
    %c0_i32 = arith.constant 0 : i32
    %c0_i32_0 = arith.constant 0 : i32
    return %arg0, %c0_i32 : i32, i32
  }
  func.func @transform_1(%arg0: i32) -> (i32, i32) {
    %c0_i32 = arith.constant 0 : i32
    %c0_i32_0 = arith.constant 0 : i32
    %c0_i32_1 = arith.constant 0 : i32
    return %c0_i32, %c0_i32_0 : i32, i32
  }
  func.func @transform_2(%arg0: i32) -> (i32, i32) {
    %c0_i32 = arith.constant 0 : i32
    %c0_i32_0 = arith.constant 0 : i32
    %c0_i32_1 = arith.constant 0 : i32
    return %c0_i32, %c0_i32_0 : i32, i32
  }
  func.func @transform_3(%arg0: i32) -> (i32, i32) {
    %c0_i32 = arith.constant 0 : i32
    %c0_i32_0 = arith.constant 0 : i32
    %c0_i32_1 = arith.constant 0 : i32
    return %c0_i32, %c0_i32_0 : i32, i32
  }
  func.func @transform_4(%arg0: i32) -> (i32, i32) {
    %c0_i32 = arith.constant 0 : i32
    %c0_i32_0 = arith.constant 0 : i32
    %c0_i32_1 = arith.constant 0 : i32
    return %c0_i32, %c0_i32_0 : i32, i32
  }
  func.func @transform_5(%arg0: i32) -> (i32, i32) {
    %c0_i32 = arith.constant 0 : i32
    %c0_i32_0 = arith.constant 0 : i32
    return %arg0, %c0_i32 : i32, i32
  }
}

</mosaic_0001>

<llo_original>
// kernel: feed_forward.1
$region0: #{feed_forward.1}
  #allocation0 [shape = 'u32[]', space=smem, size = 0x4, offset = 0x4, fixed_abs, tag = 'smem constant byte address 0x4 - core index']
  #allocation1 [shape = 'u32[144,128]{1,0:T(1,128)}', space=vmem, size = 0x12000, scoped, tag = 'internal scratch']
  %s0 = inlined_call_operand.vmem [shape: bf16[32,128], index: 0, kind: input, shape index: {}]
  %s1 = inlined_call_operand.hbm [shape: bf16[128,256], index: 1, kind: input, shape index: {}]
  %s2 = inlined_call_operand.vmem [shape: f32[1,256], index: 2, kind: input, shape index: {}]
  %s3 = inlined_call_operand.hbm [shape: bf16[256,128], index: 3, kind: input, shape index: {}]
  %s4 = inlined_call_operand.vmem [shape: f32[1,128], index: 4, kind: input, shape index: {}]
  %s5 = inlined_call_operand.vmem [shape: f32[32,128], index: 5, kind: output, shape index: {}]
  %s6 = sld [smem:[#allocation0]]
  $region38: #{feed_forward.1} parent=0
    _
  %s8 = ssub.s32 1, %s6
  %s9 = scalar_select 0, %s8, %s6
  $region1: #{feed_forward.1} parent=0
    #allocation2 [shape = 'u8[65536]{0}', space=vmem, size = 0x10000, scoped, tag = 'input window, operand 1, single buffered']
    #allocation3 [shape = 's32[1]{0}', space=sflag, size = 0x4, scoped, tag = 'scoped memory for feed_forward.1']
    #allocation4 [shape = 'u8[65536]{0}', space=vmem, size = 0x10000, scoped, tag = 'input window, operand 3, single buffered']
    #allocation5 [shape = 's32[1]{0}', space=sflag, size = 0x4, scoped, tag = 'scoped memory for feed_forward.1']
    %10 = vsyncpa [#allocation3], 0
    %11 = vsyncpa [#allocation5], 0
    // Predicated region
    $region2: #{feed_forward.1} parent=1 // pred_check
      _
    $region3: #{feed_forward.1} parent=1 // pred_check_branch
      %13 = sbr.rel (0) target = $region5
    $region4: #{feed_forward.1} parent=1 // pred_region
      _
    $region5: #{feed_forward.1} parent=1 // pred_fallthru
      _
    // Predicated region
    $region6: #{feed_forward.1} parent=1 // pred_check
      _
    $region7: #{feed_forward.1} parent=1 // pred_check_branch
      %15 = sbr.rel (0) target = $region9
    $region8: #{feed_forward.1} parent=1 // pred_region
      %s17 = ssub.s32 2048, 2048
      %18 = vsyncadd [#allocation3], %s17
      %s19 = sshll.u32 [#allocation2], 4
      %s20 = int_to_ptr.vmem [resolvable:$true] %s19
      %25 = dma.hbm_to_vmem [thread:$0]  %s1, 2048, %s20, [#allocation3], 128, 128, 8
    $region9: #{feed_forward.1} parent=1 // pred_fallthru
      _
    // Predicated region
    $region10: #{feed_forward.1} parent=1 // pred_check
      _
    $region11: #{feed_forward.1} parent=1 // pred_check_branch
      %27 = sbr.rel (0) target = $region13
    $region12: #{feed_forward.1} parent=1 // pred_region
      _
    $region13: #{feed_forward.1} parent=1 // pred_fallthru
      _
    // Predicated region
    $region14: #{feed_forward.1} parent=1 // pred_check
      _
    $region15: #{feed_forward.1} parent=1 // pred_check_branch
      %29 = sbr.rel (0) target = $region17
    $region16: #{feed_forward.1} parent=1 // pred_region
      %s31 = ssub.s32 2048, 2048
      %32 = vsyncadd [#allocation5], %s31
      %s33 = sshll.u32 [#allocation4], 4
      %s34 = int_to_ptr.vmem [resolvable:$true] %s33
      %39 = dma.hbm_to_vmem [thread:$0]  %s3, 2048, %s34, [#allocation5], 64, 64, 4
    $region17: #{feed_forward.1} parent=1 // pred_fallthru
      _
    // Predicated region
    $region18: #{feed_forward.1} parent=1 // pred_check
      _
    $region19: #{feed_forward.1} parent=1 // pred_check_branch
      %41 = sbr.rel (0) target = $region21
    $region20: #{feed_forward.1} parent=1 // pred_region
      _
    $region21: #{feed_forward.1} parent=1 // pred_fallthru
      _
    // Predicated region
    $region22: #{feed_forward.1} parent=1 // pred_check
      _
    $region23: #{feed_forward.1} parent=1 // pred_check_branch
      %43 = sbr.rel (0) target = $region25
    $region24: #{feed_forward.1} parent=1 // pred_region
      %44 = dma.done [#allocation3], 2048
    $region25: #{feed_forward.1} parent=1 // pred_fallthru
      _
    // Predicated region
    $region26: #{feed_forward.1} parent=1 // pred_check
      _
    $region27: #{feed_forward.1} parent=1 // pred_check_branch
      %46 = sbr.rel (0) target = $region29
    $region28: #{feed_forward.1} parent=1 // pred_region
      %47 = dma.done [#allocation5], 2048
    $region29: #{feed_forward.1} parent=1 // pred_fallthru
      _
    %v49 = vld [vmem:[%s0] sm:$0xf]
    %v50 = vld [vmem:[%s0 + $0x4] sm:$0xf]
    %v51 = vld [vmem:[%s0 + $0x8] sm:$0xf]
    %v52 = vld [vmem:[%s0 + $0xc] sm:$0xf]
    %v53 = vld [vmem:[#allocation2] sm:$0xff]
    %v54 = vld [vmem:[#allocation2 + $0x8] sm:$0xff]
    %v55 = vld [vmem:[#allocation2 + $0x10] sm:$0xff]
    %v56 = vld [vmem:[#allocation2 + $0x18] sm:$0xff]
    %v57 = vld [vmem:[#allocation2 + $0x20] sm:$0xff]
    %v58 = vld [vmem:[#allocation2 + $0x28] sm:$0xff]
    %v59 = vld [vmem:[#allocation2 + $0x30] sm:$0xff]
    %v60 = vld [vmem:[#allocation2 + $0x38] sm:$0xff]
    %v61 = vld [vmem:[#allocation2 + $0x40] sm:$0xff]
    %v62 = vld [vmem:[#allocation2 + $0x48] sm:$0xff]
    %v63 = vld [vmem:[#allocation2 + $0x50] sm:$0xff]
    %v64 = vld [vmem:[#allocation2 + $0x58] sm:$0xff]
    %v65 = vld [vmem:[#allocation2 + $0x60] sm:$0xff]
    %v66 = vld [vmem:[#allocation2 + $0x68] sm:$0xff]
    %v67 = vld [vmem:[#allocation2 + $0x70] sm:$0xff]
    %v68 = vld [vmem:[#allocation2 + $0x78] sm:$0xff]
    %v69 = vld [vmem:[%s2] sm:$0x3]
    %v71 = vlaneseq
    %v72 = vshrl.u32 %v71, 7
    %v73 = vsub.s32 0, %v72
    %v74 = vrot.slane %v69, %v73
    %v75 = vlaneseq
    %v76 = vshrl.u32 %v75, 7
    %v77 = vsub.s32 1, %v76
    %v78 = vrot.slane %v69, %v77
    %v85 = vunpack.c.l.b16 %v49
    %v86 = vunpack.c.l.b16 %v50
    %v87 = vunpack.c.l.b16 %v51
    %v88 = vunpack.c.l.b16 %v52
    %v89 = vpack.c.b16 %v86, %v85
    %v90 = vpack.c.b16 %v88, %v87
    %v109 = vunpack.c.l.b16 %v53
    %v110 = vunpack.c.h.b16 %v53
    %v111 = vunpack.c.l.b16 %v54
    %v112 = vunpack.c.h.b16 %v54
    %v113 = vunpack.c.l.b16 %v55
    %v114 = vunpack.c.h.b16 %v55
    %v115 = vunpack.c.l.b16 %v56
    %v116 = vunpack.c.h.b16 %v56
    %v117 = vunpack.c.l.b16 %v57
    %v118 = vunpack.c.h.b16 %v57
    %v119 = vunpack.c.l.b16 %v58
    %v120 = vunpack.c.h.b16 %v58
    %v121 = vunpack.c.l.b16 %v59
    %v122 = vunpack.c.h.b16 %v59
    %v123 = vunpack.c.l.b16 %v60
    %v124 = vunpack.c.h.b16 %v60
    %v125 = vunpack.c.l.b16 %v61
    %v126 = vunpack.c.h.b16 %v61
    %v127 = vunpack.c.l.b16 %v62
    %v128 = vunpack.c.h.b16 %v62
    %v129 = vunpack.c.l.b16 %v63
    %v130 = vunpack.c.h.b16 %v63
    %v131 = vunpack.c.l.b16 %v64
    %v132 = vunpack.c.h.b16 %v64
    %v133 = vunpack.c.l.b16 %v65
    %v134 = vunpack.c.h.b16 %v65
    %v135 = vunpack.c.l.b16 %v66
    %v136 = vunpack.c.h.b16 %v66
    %v137 = vunpack.c.l.b16 %v67
    %v138 = vunpack.c.h.b16 %v67
    %v139 = vunpack.c.l.b16 %v68
    %v140 = vunpack.c.h.b16 %v68
    %v141 = vpack.c.b16 %v111, %v109
    %v142 = vpack.c.b16 %v112, %v110
    %v143 = vpack.c.b16 %v115, %v113
    %v144 = vpack.c.b16 %v116, %v114
    %v145 = vpack.c.b16 %v119, %v117
    %v146 = vpack.c.b16 %v120, %v118
    %v147 = vpack.c.b16 %v123, %v121
    %v148 = vpack.c.b16 %v124, %v122
    %v149 = vpack.c.b16 %v127, %v125
    %v150 = vpack.c.b16 %v128, %v126
    %v151 = vpack.c.b16 %v131, %v129
    %v152 = vpack.c.b16 %v132, %v130
    %v153 = vpack.c.b16 %v135, %v133
    %v154 = vpack.c.b16 %v136, %v134
    %v155 = vpack.c.b16 %v139, %v137
    %v156 = vpack.c.b16 %v140, %v138
    %173 = vmatprep.subr.bf16.mxu0 %v142
    %174 = vmatpush1.bf16.msra.mxu0 %v141
    %175 = vmatprep.subr.bf16.mxu0 %v144
    %176 = vmatpush1.bf16.msra.mxu0 %v143
    %177 = vmatprep.subr.bf16.mxu0 %v146
    %178 = vmatpush1.bf16.msra.mxu0 %v145
    %179 = vmatprep.subr.bf16.mxu0 %v148
    %180 = vmatpush1.bf16.msra.mxu0 %v147
    %181 = vmatprep.subr.bf16.mxu0 %v150
    %182 = vmatpush1.bf16.msra.mxu0 %v149
    %183 = vmatprep.subr.bf16.mxu0 %v152
    %184 = vmatpush1.bf16.msra.mxu0 %v151
    %185 = vmatprep.subr.bf16.mxu0 %v154
    %186 = vmatpush1.bf16.msra.mxu0 %v153
    %187 = vmatprep.subr.bf16.mxu0 %v156
    %188 = vmatpush1.bf16.msra.mxu0 %v155
    %189 = vmatprep.subr.bf16.mxu0 0
    %190 = vmatpush1.bf16.msra.mxu0 0
    %191 = vmatprep.subr.bf16.mxu0 0
    %192 = vmatpush1.bf16.msra.mxu0 0
    %193 = vmatprep.subr.bf16.mxu0 0
    %194 = vmatpush1.bf16.msra.mxu0 0
    %195 = vmatprep.subr.bf16.mxu0 0
    %196 = vmatpush1.bf16.msra.mxu0 0
    %197 = vmatprep.subr.bf16.mxu0 0
    %198 = vmatpush1.bf16.msra.mxu0 0
    %199 = vmatprep.subr.bf16.mxu0 0
    %200 = vmatpush1.bf16.msra.mxu0 0
    %201 = vmatprep.subr.bf16.mxu0 0
    %202 = vmatpush1.bf16.msra.mxu0 0
    %203 = vmatprep.subr.bf16.mxu0 0
    %204 = vmatpush1.bf16.msra.mxu0 0
    %205 = vmatprep.mubr.bf16.mxu0 0
    %206 = vmatmul.mubr.bf16.gmra.mrb[0].mxu0 %v89
    %v207 = vpop.f32.mrb[0].mxu0
    %v208 = vadd.f32 %v74, %v207
    %v209 = vpop.f32.mrb[0].mxu0
    %v210 = vadd.f32 %v78, %v209
    %v211 = vpop.f32.mrb[0].mxu0
    %v212 = vadd.f32 %v74, %v211
    %v213 = vpop.f32.mrb[0].mxu0
    %v214 = vadd.f32 %v78, %v213
    %215 = vmatprep.mubr.bf16.mxu0 0
    %216 = vmatmul.mubr.bf16.gmra.mrb[0].mxu0 %v90
    %v217 = vpop.f32.mrb[0].mxu0
    %v218 = vadd.f32 %v74, %v217
    %v219 = vpop.f32.mrb[0].mxu0
    %v220 = vadd.f32 %v78, %v219
    %v221 = vpop.f32.mrb[0].mxu0
    %v222 = vadd.f32 %v74, %v221
    %v223 = vpop.f32.mrb[0].mxu0
    %v224 = vadd.f32 %v78, %v223
    %225 = vdwg.mxu0
    %v226 = vmul.f32 %v208, 0.5
    %v227 = vmul.f32 %v210, 0.5
    %v228 = vmul.f32 %v212, 0.5
    %v229 = vmul.f32 %v214, 0.5
    %v230 = vmul.f32 %v218, 0.5
    %v231 = vmul.f32 %v220, 0.5
    %v232 = vmul.f32 %v222, 0.5
    %v233 = vmul.f32 %v224, 0.5
    %v234 = vmul.f32 %v208, %v208
    %v235 = vmul.f32 %v210, %v210
    %v236 = vmul.f32 %v212, %v212
    %v237 = vmul.f32 %v214, %v214
    %v238 = vmul.f32 %v218, %v218
    %v239 = vmul.f32 %v220, %v220
    %v240 = vmul.f32 %v222, %v222
    %v241 = vmul.f32 %v224, %v224
    %v242 = vmul.f32 %v234, %v208
    %v243 = vmul.f32 %v235, %v210
    %v244 = vmul.f32 %v236, %v212
    %v245 = vmul.f32 %v237, %v214
    %v246 = vmul.f32 %v238, %v218
    %v247 = vmul.f32 %v239, %v220
    %v248 = vmul.f32 %v240, %v222
    %v249 = vmul.f32 %v241, %v224
    %v250 = vmul.f32 %v242, 0.044715
    %v251 = vmul.f32 %v243, 0.044715
    %v252 = vmul.f32 %v244, 0.044715
    %v253 = vmul.f32 %v245, 0.044715
    %v254 = vmul.f32 %v246, 0.044715
    %v255 = vmul.f32 %v247, 0.044715
    %v256 = vmul.f32 %v248, 0.044715
    %v257 = vmul.f32 %v249, 0.044715
    %v258 = vadd.f32 %v208, %v250
    %v259 = vadd.f32 %v210, %v251
    %v260 = vadd.f32 %v212, %v252
    %v261 = vadd.f32 %v214, %v253
    %v262 = vadd.f32 %v218, %v254
    %v263 = vadd.f32 %v220, %v255
    %v264 = vadd.f32 %v222, %v256
    %v265 = vadd.f32 %v224, %v257
    %v266 = vmul.f32 %v258, 0.7978846
    %v267 = vmul.f32 %v259, 0.7978846
    %v268 = vmul.f32 %v260, 0.7978846
    %v269 = vmul.f32 %v261, 0.7978846
    %v270 = vmul.f32 %v262, 0.7978846
    %v271 = vmul.f32 %v263, 0.7978846
    %v272 = vmul.f32 %v264, 0.7978846
    %v273 = vmul.f32 %v265, 0.7978846
    %v274 = vtanh.pop %v266
    %v275 = vtanh.pop %v267
    %v276 = vtanh.pop %v268
    %v277 = vtanh.pop %v269
    %v278 = vtanh.pop %v270
    %v279 = vtanh.pop %v271
    %v280 = vtanh.pop %v272
    %v281 = vtanh.pop %v273
    %v282 = vadd.f32 %v274, 1.0
    %v283 = vadd.f32 %v275, 1.0
    %v284 = vadd.f32 %v276, 1.0
    %v285 = vadd.f32 %v277, 1.0
    %v286 = vadd.f32 %v278, 1.0
    %v287 = vadd.f32 %v279, 1.0
    %v288 = vadd.f32 %v280, 1.0
    %v289 = vadd.f32 %v281, 1.0
    %v290 = vmul.f32 %v226, %v282
    %v291 = vmul.f32 %v227, %v283
    %v292 = vmul.f32 %v228, %v284
    %v293 = vmul.f32 %v229, %v285
    %v294 = vmul.f32 %v230, %v286
    %v295 = vmul.f32 %v231, %v287
    %v296 = vmul.f32 %v232, %v288
    %v297 = vmul.f32 %v233, %v289
    %v298 = vpack.c.bf16 %v292, %v290
    %v299 = vpack.c.bf16 %v293, %v291
    %v300 = vpack.c.bf16 %v296, %v294
    %v301 = vpack.c.bf16 %v297, %v295
    %v302 = vld [vmem:[#allocation4] sm:$0xf]
    %v303 = vld [vmem:[#allocation4 + $0x4] sm:$0xf]
    %v304 = vld [vmem:[#allocation4 + $0x8] sm:$0xf]
    %v305 = vld [vmem:[#allocation4 + $0xc] sm:$0xf]
    %v306 = vld [vmem:[#allocation4 + $0x10] sm:$0xf]
    %v307 = vld [vmem:[#allocation4 + $0x14] sm:$0xf]
    %v308 = vld [vmem:[#allocation4 + $0x18] sm:$0xf]
    %v309 = vld [vmem:[#allocation4 + $0x1c] sm:$0xf]
    %v310 = vld [vmem:[#allocation4 + $0x20] sm:$0xf]
    %v311 = vld [vmem:[#allocation4 + $0x24] sm:$0xf]
    %v312 = vld [vmem:[#allocation4 + $0x28] sm:$0xf]
    %v313 = vld [vmem:[#allocation4 + $0x2c] sm:$0xf]
    %v314 = vld [vmem:[#allocation4 + $0x30] sm:$0xf]
    %v315 = vld [vmem:[#allocation4 + $0x34] sm:$0xf]
    %v316 = vld [vmem:[#allocation4 + $0x38] sm:$0xf]
    %v317 = vld [vmem:[#allocation4 + $0x3c] sm:$0xf]
    %v318 = vld [vmem:[#allocation4 + $0x40] sm:$0xf]
    %v319 = vld [vmem:[#allocation4 + $0x44] sm:$0xf]
    %v320 = vld [vmem:[#allocation4 + $0x48] sm:$0xf]
    %v321 = vld [vmem:[#allocation4 + $0x4c] sm:$0xf]
    %v322 = vld [vmem:[#allocation4 + $0x50] sm:$0xf]
    %v323 = vld [vmem:[#allocation4 + $0x54] sm:$0xf]
    %v324 = vld [vmem:[#allocation4 + $0x58] sm:$0xf]
    %v325 = vld [vmem:[#allocation4 + $0x5c] sm:$0xf]
    %v326 = vld [vmem:[#allocation4 + $0x60] sm:$0xf]
    %v327 = vld [vmem:[#allocation4 + $0x64] sm:$0xf]
    %v328 = vld [vmem:[#allocation4 + $0x68] sm:$0xf]
    %v329 = vld [vmem:[#allocation4 + $0x6c] sm:$0xf]
    %v330 = vld [vmem:[#allocation4 + $0x70] sm:$0xf]
    %v331 = vld [vmem:[#allocation4 + $0x74] sm:$0xf]
    %v332 = vld [vmem:[#allocation4 + $0x78] sm:$0xf]
    %v333 = vld [vmem:[#allocation4 + $0x7c] sm:$0xf]
    %v334 = vld [vmem:[%s4] sm:$0x1]
    %v336 = vlaneseq
    %v337 = vshrl.u32 %v336, 7
    %v338 = vsub.s32 0, %v337
    %v339 = vrot.slane %v334, %v338
    %v373 = vunpack.c.l.b16 %v302
    %v374 = vunpack.c.l.b16 %v303
    %v375 = vunpack.c.l.b16 %v304
    %v376 = vunpack.c.l.b16 %v305
    %v377 = vunpack.c.l.b16 %v306
    %v378 = vunpack.c.l.b16 %v307
    %v379 = vunpack.c.l.b16 %v308
    %v380 = vunpack.c.l.b16 %v309
    %v381 = vunpack.c.l.b16 %v310
    %v382 = vunpack.c.l.b16 %v311
    %v383 = vunpack.c.l.b16 %v312
    %v384 = vunpack.c.l.b16 %v313
    %v385 = vunpack.c.l.b16 %v314
    %v386 = vunpack.c.l.b16 %v315
    %v387 = vunpack.c.l.b16 %v316
    %v388 = vunpack.c.l.b16 %v317
    %v389 = vunpack.c.l.b16 %v318
    %v390 = vunpack.c.l.b16 %v319
    %v391 = vunpack.c.l.b16 %v320
    %v392 = vunpack.c.l.b16 %v321
    %v393 = vunpack.c.l.b16 %v322
    %v394 = vunpack.c.l.b16 %v323
    %v395 = vunpack.c.l.b16 %v324
    %v396 = vunpack.c.l.b16 %v325
    %v397 = vunpack.c.l.b16 %v326
    %v398 = vunpack.c.l.b16 %v327
    %v399 = vunpack.c.l.b16 %v328
    %v400 = vunpack.c.l.b16 %v329
    %v401 = vunpack.c.l.b16 %v330
    %v402 = vunpack.c.l.b16 %v331
    %v403 = vunpack.c.l.b16 %v332
    %v404 = vunpack.c.l.b16 %v333
    %v405 = vpack.c.b16 %v374, %v373
    %v406 = vpack.c.b16 %v376, %v375
    %v407 = vpack.c.b16 %v378, %v377
    %v408 = vpack.c.b16 %v380, %v379
    %v409 = vpack.c.b16 %v382, %v381
    %v410 = vpack.c.b16 %v384, %v383
    %v411 = vpack.c.b16 %v386, %v385
    %v412 = vpack.c.b16 %v388, %v387
    %v413 = vpack.c.b16 %v390, %v389
    %v414 = vpack.c.b16 %v392, %v391
    %v415 = vpack.c.b16 %v394, %v393
    %v416 = vpack.c.b16 %v396, %v395
    %v417 = vpack.c.b16 %v398, %v397
    %v418 = vpack.c.b16 %v400, %v399
    %v419 = vpack.c.b16 %v402, %v401
    %v420 = vpack.c.b16 %v404, %v403
    %437 = vmatprep.subr.bf16.mxu0 0
    %438 = vmatpush1.bf16.msra.mxu0 %v405
    %439 = vmatprep.subr.bf16.mxu0 0
    %440 = vmatpush1.bf16.msra.mxu0 %v406
    %441 = vmatprep.subr.bf16.mxu0 0
    %442 = vmatpush1.bf16.msra.mxu0 %v407
    %443 = vmatprep.subr.bf16.mxu0 0
    %444 = vmatpush1.bf16.msra.mxu0 %v408
    %445 = vmatprep.subr.bf16.mxu0 0
    %446 = vmatpush1.bf16.msra.mxu0 %v409
    %447 = vmatprep.subr.bf16.mxu0 0
    %448 = vmatpush1.bf16.msra.mxu0 %v410
    %449 = vmatprep.subr.bf16.mxu0 0
    %450 = vmatpush1.bf16.msra.mxu0 %v411
    %451 = vmatprep.subr.bf16.mxu0 0
    %452 = vmatpush1.bf16.msra.mxu0 %v412
    %453 = vmatprep.subr.bf16.mxu0 0
    %454 = vmatpush1.bf16.msra.mxu0 %v413
    %455 = vmatprep.subr.bf16.mxu0 0
    %456 = vmatpush1.bf16.msra.mxu0 %v414
    %457 = vmatprep.subr.bf16.mxu0 0
    %458 = vmatpush1.bf16.msra.mxu0 %v415
    %459 = vmatprep.subr.bf16.mxu0 0
    %460 = vmatpush1.bf16.msra.mxu0 %v416
    %461 = vmatprep.subr.bf16.mxu0 0
    %462 = vmatpush1.bf16.msra.mxu0 %v417
    %463 = vmatprep.subr.bf16.mxu0 0
    %464 = vmatpush1.bf16.msra.mxu0 %v418
    %465 = vmatprep.subr.bf16.mxu0 0
    %466 = vmatpush1.bf16.msra.mxu0 %v419
    %467 = vmatprep.subr.bf16.mxu0 0
    %468 = vmatpush1.bf16.msra.mxu0 %v420
    %469 = vmatprep.mubr.bf16.mxu0 %v299
    %470 = vmatmul.mubr.bf16.gmra.mrb[0].mxu0 %v298
    %v471 = vpop.f32.mrb[0].mxu0
    %v472 = vadd.f32 %v339, %v471
    %v473 = vpop.f32.mrb[0].mxu0
    %v474 = vpop.f32.mrb[0].mxu0
    %v475 = vadd.f32 %v339, %v474
    %v476 = vpop.f32.mrb[0].mxu0
    %477 = vmatprep.mubr.bf16.mxu0 %v301
    %478 = vmatmul.mubr.bf16.gmra.mrb[0].mxu0 %v300
    %v479 = vpop.f32.mrb[0].mxu0
    %v480 = vadd.f32 %v339, %v479
    %v481 = vpop.f32.mrb[0].mxu0
    %v482 = vpop.f32.mrb[0].mxu0
    %v483 = vadd.f32 %v339, %v482
    %v484 = vpop.f32.mrb[0].mxu0
    %485 = vdwg.mxu0
    %486 = vst [vmem:[%s5] sm:$0xff] %v472
    %487 = vst [vmem:[%s5 + $0x8] sm:$0xff] %v475
    %488 = vst [vmem:[%s5 + $0x10] sm:$0xff] %v480
    %489 = vst [vmem:[%s5 + $0x18] sm:$0xff] %v483
    // Predicated region
    $region30: #{feed_forward.1} parent=1 // pred_check
      _
    $region31: #{feed_forward.1} parent=1 // pred_check_branch
      %491 = sbr.rel (0) target = $region33
    $region32: #{feed_forward.1} parent=1 // pred_region
      _
    $region33: #{feed_forward.1} parent=1 // pred_fallthru
      _
    // Predicated region
    $region34: #{feed_forward.1} parent=1 // pred_check
      _
    $region35: #{feed_forward.1} parent=1 // pred_check_branch
      %493 = sbr.rel (0) target = $region37
    $region36: #{feed_forward.1} parent=1 // pred_region
      _
    $region37: #{feed_forward.1} parent=1 // pred_fallthru
      _
    %494 = vsyncpa [#allocation3], 1
    %495 = vsyncpa [#allocation5], 1

</llo_original>
